<compile_context>
chip_gen: v6e
topology: v6e:2x2x1
jax: 0.10.0
libtpu: 0.0.40
codegen_flags: <defaults>
</compile_context>

<pallas_src>
import jax
import jax.numpy as jnp
from jax.experimental import pallas as pl
from jax.experimental.pallas import tpu as pltpu

FOLD = 4  # batch rows folded into the lane/feature axis via block-diag weights


def _leaky_relu(x, slope=0.01):
    # PyTorch F.leaky_relu default negative_slope = 0.01
    return jnp.where(x > 0, x, slope * x)


def _round_up(n, m):
    return ((n + m - 1) // m) * m


def _block_diag(w, r):
    """(fi, fo) -> (r*fi, r*fo) block-diagonal with r copies of w."""
    fi, fo = w.shape
    out = jnp.zeros((r * fi, r * fo), w.dtype)
    for j in range(r):
        out = out.at[j * fi:(j + 1) * fi, j * fo:(j + 1) * fo].set(w)
    return out


def mlp_kernel(x_ref, w1_ref, b1_ref, w2_ref, b2_ref, w3_ref, b3_ref,
               wo_ref, bo_ref, o_ref):
    # x tile: (tile_b/FOLD, FOLD*F) f32 -> bf16 cast in-kernel (hidden by DMA).
    x = x_ref[...].astype(jnp.bfloat16)

    h = jnp.dot(x, w1_ref[...], preferred_element_type=jnp.float32) + b1_ref[...]
    h = _leaky_relu(h).astype(jnp.bfloat16)

    h = jnp.dot(h, w2_ref[...], preferred_element_type=jnp.float32) + b2_ref[...]
    h = _leaky_relu(h).astype(jnp.bfloat16)

    h = jnp.dot(h, w3_ref[...], preferred_element_type=jnp.float32) + b3_ref[...]
    h = _leaky_relu(h).astype(jnp.bfloat16)

    # Block-diagonal final layer: (rows, 256) @ (256, FOLD) -> (rows, FOLD);
    # column j holds the output of folded sub-batch j.
    y = jnp.dot(h, wo_ref[...], preferred_element_type=jnp.float32) + bo_ref[...]
    o_ref[...] = jnp.tanh(y).astype(o_ref.dtype)


def simple_mlp_forward(x, params, *, tile_b=1024):
    """x: (B, F) float. params: w1..w3 (in,out), wo (64,1), biases (1,out).
    Returns (B, 1) float32."""
    B, F = x.shape
    x = x.astype(jnp.float32)

    # 128-aligned batch tile (lane-dense folded layout, bf16-friendly packing).
    tile_b = max(128, _round_up(min(tile_b, B), 128))
    # Prefer >= 2 grid steps when the batch allows it so the "parallel" grid
    # axis can shard across both v7x TensorCores.
    if B > 128:
        tile_b = min(tile_b, _round_up(-(-B // 2), 128))
    B_pad = _round_up(B, tile_b)
    num_tiles = B_pad // tile_b
    rows = tile_b // FOLD

    if B_pad != B:
        x = jnp.pad(x, ((0, B_pad - B), (0, 0)))
    # Fold FOLD batch rows into the feature axis: pure metadata reshape (no HBM
    # traffic); folded row i = batch rows FOLD*i .. FOLD*i+FOLD-1 concatenated.
    x_f = x.reshape(B_pad // FOLD, FOLD * F)

    # Block-diagonal bf16 weights (each folded sub-batch gets its own copy);
    # biases stay f32 and add onto the f32 MXU accumulator.
    w1 = _block_diag(params["w1"], FOLD).astype(jnp.bfloat16)   # (4F, 256)
    w2 = _block_diag(params["w2"], FOLD).astype(jnp.bfloat16)   # (256, 256)
    w3 = _block_diag(params["w3"], FOLD).astype(jnp.bfloat16)   # (256, 256)
    wo = _block_diag(params["wo"], FOLD).astype(jnp.bfloat16)   # (256, FOLD)
    b1 = jnp.tile(params["b1"].astype(jnp.float32), (1, FOLD))  # (1, 256)
    b2 = jnp.tile(params["b2"].astype(jnp.float32), (1, FOLD))
    b3 = jnp.tile(params["b3"].astype(jnp.float32), (1, FOLD))
    bo = params["bo"].reshape(1, 1).astype(jnp.float32)

    # Loop-invariant operands: whole array as one block (stays VMEM-resident).
    full = lambda a: pl.BlockSpec(a.shape, lambda i: (0, 0))

    cost = pl.CostEstimate(
        flops=2 * B_pad * (F * 64 + 64 * 64 + 64 * 64 + 64),
        transcendentals=B_pad,
        bytes_accessed=B_pad * (4 * F + 4)
        + 2 * int(w1.size + w2.size + w3.size + wo.size),
    )

    out = pl.pallas_call(
        mlp_kernel,
        out_shape=jax.ShapeDtypeStruct((B_pad // FOLD, FOLD), jnp.float32),
        grid=(num_tiles,),
        in_specs=[
            pl.BlockSpec((rows, FOLD * F), lambda i: (i, 0)),   # streamed x tile
            full(w1), full(b1),
            full(w2), full(b2),
            full(w3), full(b3),
            full(wo), full(bo),
        ],
        out_specs=pl.BlockSpec((rows, FOLD), lambda i: (i, 0)),
        compiler_params=pltpu.CompilerParams(
            dimension_semantics=("parallel",)),
        cost_estimate=cost,
        # VMEM per step at F=32: ~128 KiB x-tile (x2 buffers) + ~320 KiB
        # resident weights + transient intermediates -> far under the 32 MiB
        # scoped default on every generation; no vmem_limit_bytes override.
    )(x_f, w1, b1, w2, b2, w3, b3, wo, bo)

    # (B_pad/FOLD, FOLD) row-major == original batch order -> (B_pad, 1).
    return out.reshape(B_pad, 1)[:B]


def init_params(key, input_shape):
    """Deterministic init mimicking PyTorch Linear's U(-1/sqrt(fan_in), 1/sqrt(fan_in))."""
    dims = [(input_shape, 64), (64, 64), (64, 64), (64, 1)]
    names = ["1", "2", "3", "o"]
    params = {}
    keys = jax.random.split(key, 2 * len(dims))
    for n, (fan_in, fan_out), kw, kb in zip(names, dims, keys[0::2], keys[1::2]):
        bound = 1.0 / (fan_in ** 0.5)
        params[f"w{n}"] = jax.random.uniform(
            kw, (fan_in, fan_out), jnp.float32, minval=-bound, maxval=bound)
        params[f"b{n}"] = jax.random.uniform(
            kb, (1, fan_out), jnp.float32, minval=-bound, maxval=bound)
    return params


def _reference(x, p):
    h = x
    for n in ["1", "2", "3"]:
        h = _leaky_relu(h @ p[f"w{n}"] + p[f"b{n}"])
    return jnp.tanh(h @ p["wo"] + p["bo"])


if __name__ == "__main__":
    key = jax.random.PRNGKey(0)
    kx, kp, kx2 = jax.random.split(key, 3)

    B, F = 8, 32
    x = jax.random.normal(kx, (B, F), jnp.float32)
    params = init_params(kp, F)

    y = jax.block_until_ready(simple_mlp_forward(x, params))
    y_ref = _reference(x, params)
    assert y.shape == (B, 1)
    # bf16 matmuls with f32 accumulation vs. f32 reference -> loosened tolerance.
    assert jnp.allclose(y, y_ref, atol=3e-2, rtol=3e-2)

    # Multi-tile + ragged-padding path: B=300, tile_b=128 -> padded to 384 rows,
    # grid of 3 steps, folded tiles of (32, 128).
    B2 = 300
    x2 = jax.random.normal(kx2, (B2, F), jnp.float32)
    y2 = jax.block_until_ready(simple_mlp_forward(x2, params, tile_b=128))
    y2_ref = _reference(x2, params)
    assert y2.shape == (B2, 1)
    assert jnp.allclose(y2, y2_ref, atol=3e-2, rtol=3e-2)

    print("KERNEL_OK")
</pallas_src>

<mosaic_0001>
module attributes {stable_mosaic.version = 11 : i64} {
  func.func @mlp_kernel(%arg0: i32, %arg1: memref<32x128xf32, #tpu.memory_space<vmem>>, %arg2: memref<128x256xbf16, #tpu.memory_space<vmem>>, %arg3: memref<1x256xf32, #tpu.memory_space<vmem>>, %arg4: memref<256x256xbf16, #tpu.memory_space<vmem>>, %arg5: memref<1x256xf32, #tpu.memory_space<vmem>>, %arg6: memref<256x256xbf16, #tpu.memory_space<vmem>>, %arg7: memref<1x256xf32, #tpu.memory_space<vmem>>, %arg8: memref<256x4xbf16, #tpu.memory_space<vmem>>, %arg9: memref<1x1xf32, #tpu.memory_space<vmem>>, %arg10: memref<32x4xf32, #tpu.memory_space<vmem>>) attributes {dimension_semantics = [#tpu.dimension_semantics<parallel>], iteration_bounds = array<i64: 1>, scalar_prefetch = 0 : i64, scratch_operands = 0 : i64, tpu.core_type = #tpu.core_type<tc>, window_params = [{transform_indices = @transform_0, window_bounds = array<i64: 32, 128>}, {pipeline_mode = #tpu.pipeline_mode<synchronous>, transform_indices = @transform_1, window_bounds = array<i64: 128, 256>}, {pipeline_mode = #tpu.pipeline_mode<synchronous>, transform_indices = @transform_2, window_bounds = array<i64: 1, 256>}, {pipeline_mode = #tpu.pipeline_mode<synchronous>, transform_indices = @transform_3, window_bounds = array<i64: 256, 256>}, {pipeline_mode = #tpu.pipeline_mode<synchronous>, transform_indices = @transform_4, window_bounds = array<i64: 1, 256>}, {pipeline_mode = #tpu.pipeline_mode<synchronous>, transform_indices = @transform_5, window_bounds = array<i64: 256, 256>}, {pipeline_mode = #tpu.pipeline_mode<synchronous>, transform_indices = @transform_6, window_bounds = array<i64: 1, 256>}, {pipeline_mode = #tpu.pipeline_mode<synchronous>, transform_indices = @transform_7, window_bounds = array<i64: 256, 4>}, {pipeline_mode = #tpu.pipeline_mode<synchronous>, transform_indices = @transform_8, window_bounds = array<i64: 1, 1>}, {transform_indices = @transform_9, window_bounds = array<i64: 32, 4>}]} {
    %c0 = arith.constant 0 : index
    %c0_0 = arith.constant 0 : index
    %0 = vector.load %arg1[%c0, %c0_0] : memref<32x128xf32, #tpu.memory_space<vmem>>, vector<32x128xf32>
    %1 = arith.truncf %0 : vector<32x128xf32> to vector<32x128xbf16>
    %c0_1 = arith.constant 0 : index
    %c0_2 = arith.constant 0 : index
    %2 = vector.load %arg2[%c0_1, %c0_2] : memref<128x256xbf16, #tpu.memory_space<vmem>>, vector<128x256xbf16>
    %cst = arith.constant dense<0.000000e+00> : vector<32x256xf32>
    %3 = tpu.matmul %1, %2, %cst {dimension_numbers = #tpu.dot_dimension_numbers<[1], [0], [0], [1], [0, 0, 1, 1], [], []>} : vector<32x128xbf16>, vector<128x256xbf16>, vector<32x256xf32> -> vector<32x256xf32>
    %c0_3 = arith.constant 0 : index
    %c0_4 = arith.constant 0 : index
    %4 = vector.load %arg3[%c0_3, %c0_4] : memref<1x256xf32, #tpu.memory_space<vmem>>, vector<1x256xf32>
    %5 = vector.broadcast %4 : vector<1x256xf32> to vector<32x256xf32>
    %6 = arith.addf %3, %5 : vector<32x256xf32>
    %cst_5 = arith.constant 0.000000e+00 : f32
    %7 = vector.broadcast %cst_5 : f32 to vector<32x256xf32>
    %8 = arith.cmpf ogt, %6, %7 : vector<32x256xf32>
    %cst_6 = arith.constant 0.00999999977 : f32
    %9 = vector.broadcast %cst_6 : f32 to vector<32x256xf32>
    %10 = arith.mulf %9, %6 : vector<32x256xf32>
    %11 = arith.select %8, %6, %10 : vector<32x256xi1>, vector<32x256xf32>
    %12 = arith.truncf %11 : vector<32x256xf32> to vector<32x256xbf16>
    %c0_7 = arith.constant 0 : index
    %c0_8 = arith.constant 0 : index
    %13 = vector.load %arg4[%c0_7, %c0_8] : memref<256x256xbf16, #tpu.memory_space<vmem>>, vector<256x256xbf16>
    %cst_9 = arith.constant dense<0.000000e+00> : vector<32x256xf32>
    %14 = tpu.matmul %12, %13, %cst_9 {dimension_numbers = #tpu.dot_dimension_numbers<[1], [0], [0], [1], [0, 0, 1, 1], [], []>} : vector<32x256xbf16>, vector<256x256xbf16>, vector<32x256xf32> -> vector<32x256xf32>
    %c0_10 = arith.constant 0 : index
    %c0_11 = arith.constant 0 : index
    %15 = vector.load %arg5[%c0_10, %c0_11] : memref<1x256xf32, #tpu.memory_space<vmem>>, vector<1x256xf32>
    %16 = vector.broadcast %15 : vector<1x256xf32> to vector<32x256xf32>
    %17 = arith.addf %14, %16 : vector<32x256xf32>
    %cst_12 = arith.constant 0.000000e+00 : f32
    %18 = vector.broadcast %cst_12 : f32 to vector<32x256xf32>
    %19 = arith.cmpf ogt, %17, %18 : vector<32x256xf32>
    %cst_13 = arith.constant 0.00999999977 : f32
    %20 = vector.broadcast %cst_13 : f32 to vector<32x256xf32>
    %21 = arith.mulf %20, %17 : vector<32x256xf32>
    %22 = arith.select %19, %17, %21 : vector<32x256xi1>, vector<32x256xf32>
    %23 = arith.truncf %22 : vector<32x256xf32> to vector<32x256xbf16>
    %c0_14 = arith.constant 0 : index
    %c0_15 = arith.constant 0 : index
    %24 = vector.load %arg6[%c0_14, %c0_15] : memref<256x256xbf16, #tpu.memory_space<vmem>>, vector<256x256xbf16>
    %cst_16 = arith.constant dense<0.000000e+00> : vector<32x256xf32>
    %25 = tpu.matmul %23, %24, %cst_16 {dimension_numbers = #tpu.dot_dimension_numbers<[1], [0], [0], [1], [0, 0, 1, 1], [], []>} : vector<32x256xbf16>, vector<256x256xbf16>, vector<32x256xf32> -> vector<32x256xf32>
    %c0_17 = arith.constant 0 : index
    %c0_18 = arith.constant 0 : index
    %26 = vector.load %arg7[%c0_17, %c0_18] : memref<1x256xf32, #tpu.memory_space<vmem>>, vector<1x256xf32>
    %27 = vector.broadcast %26 : vector<1x256xf32> to vector<32x256xf32>
    %28 = arith.addf %25, %27 : vector<32x256xf32>
    %cst_19 = arith.constant 0.000000e+00 : f32
    %29 = vector.broadcast %cst_19 : f32 to vector<32x256xf32>
    %30 = arith.cmpf ogt, %28, %29 : vector<32x256xf32>
    %cst_20 = arith.constant 0.00999999977 : f32
    %31 = vector.broadcast %cst_20 : f32 to vector<32x256xf32>
    %32 = arith.mulf %31, %28 : vector<32x256xf32>
    %33 = arith.select %30, %28, %32 : vector<32x256xi1>, vector<32x256xf32>
    %34 = arith.truncf %33 : vector<32x256xf32> to vector<32x256xbf16>
    %c0_21 = arith.constant 0 : index
    %c0_22 = arith.constant 0 : index
    %35 = vector.load %arg8[%c0_21, %c0_22] : memref<256x4xbf16, #tpu.memory_space<vmem>>, vector<256x4xbf16>
    %cst_23 = arith.constant dense<0.000000e+00> : vector<32x4xf32>
    %36 = tpu.matmul %34, %35, %cst_23 {dimension_numbers = #tpu.dot_dimension_numbers<[1], [0], [0], [1], [0, 0, 1, 1], [], []>} : vector<32x256xbf16>, vector<256x4xbf16>, vector<32x4xf32> -> vector<32x4xf32>
    %c0_24 = arith.constant 0 : index
    %c0_25 = arith.constant 0 : index
    %37 = vector.load %arg9[%c0_24, %c0_25] : memref<1x1xf32, #tpu.memory_space<vmem>>, vector<1x1xf32>
    %38 = vector.broadcast %37 : vector<1x1xf32> to vector<32x4xf32>
    %39 = arith.addf %36, %38 : vector<32x4xf32>
    %40 = math.tanh %39 : vector<32x4xf32>
    %c0_26 = arith.constant 0 : index
    %c0_27 = arith.constant 0 : index
    %41 = vector.load %arg10[%c0_26, %c0_27] : memref<32x4xf32, #tpu.memory_space<vmem>>, vector<32x4xf32>
    tpu.vector_store %arg10[%c0_26, %c0_27], %40 {strides = array<i32>} : memref<32x4xf32, #tpu.memory_space<vmem>>, vector<32x4xf32>,
    return
  }
  func.func @transform_0(%arg0: i32) -> (i32, i32) {
    %c0_i32 = arith.constant 0 : i32
    %c0_i32_0 = arith.constant 0 : i32
    return %arg0, %c0_i32 : i32, i32
  }
  func.func @transform_1(%arg0: i32) -> (i32, i32) {
    %c0_i32 = arith.constant 0 : i32
    %c0_i32_0 = arith.constant 0 : i32
    %c0_i32_1 = arith.constant 0 : i32
    return %c0_i32, %c0_i32_0 : i32, i32
  }
  func.func @transform_2(%arg0: i32) -> (i32, i32) {
    %c0_i32 = arith.constant 0 : i32
    %c0_i32_0 = arith.constant 0 : i32
    %c0_i32_1 = arith.constant 0 : i32
    return %c0_i32, %c0_i32_0 : i32, i32
  }
  func.func @transform_3(%arg0: i32) -> (i32, i32) {
    %c0_i32 = arith.constant 0 : i32
    %c0_i32_0 = arith.constant 0 : i32
    %c0_i32_1 = arith.constant 0 : i32
    return %c0_i32, %c0_i32_0 : i32, i32
  }
  func.func @transform_4(%arg0: i32) -> (i32, i32) {
    %c0_i32 = arith.constant 0 : i32
    %c0_i32_0 = arith.constant 0 : i32
    %c0_i32_1 = arith.constant 0 : i32
    return %c0_i32, %c0_i32_0 : i32, i32
  }
  func.func @transform_5(%arg0: i32) -> (i32, i32) {
    %c0_i32 = arith.constant 0 : i32
    %c0_i32_0 = arith.constant 0 : i32
    %c0_i32_1 = arith.constant 0 : i32
    return %c0_i32, %c0_i32_0 : i32, i32
  }
  func.func @transform_6(%arg0: i32) -> (i32, i32) {
    %c0_i32 = arith.constant 0 : i32
    %c0_i32_0 = arith.constant 0 : i32
    %c0_i32_1 = arith.constant 0 : i32
    return %c0_i32, %c0_i32_0 : i32, i32
  }
  func.func @transform_7(%arg0: i32) -> (i32, i32) {
    %c0_i32 = arith.constant 0 : i32
    %c0_i32_0 = arith.constant 0 : i32
    %c0_i32_1 = arith.constant 0 : i32
    return %c0_i32, %c0_i32_0 : i32, i32
  }
  func.func @transform_8(%arg0: i32) -> (i32, i32) {
    %c0_i32 = arith.constant 0 : i32
    %c0_i32_0 = arith.constant 0 : i32
    %c0_i32_1 = arith.constant 0 : i32
    return %c0_i32, %c0_i32_0 : i32, i32
  }
  func.func @transform_9(%arg0: i32) -> (i32, i32) {
    %c0_i32 = arith.constant 0 : i32
    %c0_i32_0 = arith.constant 0 : i32
    return %arg0, %c0_i32 : i32, i32
  }
}

</mosaic_0001>

<llo_original>
// kernel: tpu_custom_call.1
$region0: #{tpu_custom_call.1}
  #allocation0 [shape = 'u32[]', space=smem, size = 0x4, offset = 0x4, fixed_abs, tag = 'smem constant byte address 0x4 - core index']
  #allocation1 [shape = 'u32[144,128]{1,0:T(1,128)}', space=vmem, size = 0x12000, scoped, tag = 'internal scratch']
  #allocation2 [shape = 'f32[1,1]{1,0:T(1,128)S(1)}', space=vmem, size = 0x200, scoped, tag = 'scoped memory for tpu_custom_call.1']
  %s0 = inlined_call_operand.hbm [shape: f32[32,128], index: 0, kind: input, shape index: {}]
  %s1 = inlined_call_operand.vmem [shape: bf16[128,256], index: 1, kind: input, shape index: {}]
  %s2 = inlined_call_operand.vmem [shape: f32[1,256], index: 2, kind: input, shape index: {}]
  %s3 = inlined_call_operand.hbm [shape: bf16[256,256], index: 3, kind: input, shape index: {}]
  %s4 = inlined_call_operand.vmem [shape: f32[1,256], index: 4, kind: input, shape index: {}]
  %s5 = inlined_call_operand.hbm [shape: bf16[256,256], index: 5, kind: input, shape index: {}]
  %s6 = inlined_call_operand.vmem [shape: f32[1,256], index: 6, kind: input, shape index: {}]
  %s7 = inlined_call_operand.vmem [shape: bf16[256,4], index: 7, kind: input, shape index: {}]
  %s8 = inlined_call_operand.<no memory space> [shape: f32[1,1], index: 8, kind: input, shape index: {}]
  %s9 = inlined_call_operand.vmem [shape: f32[32,4], index: 9, kind: output, shape index: {}]
  %s10 = sld [smem:[#allocation0]]
  $region58: #{tpu_custom_call.1} parent=0
    _
  %s12 = ssub.s32 1, %s10
  %s13 = scalar_select 0, %s12, %s10
  %v14 = vstv %s8
  %15 = vst [vmem:[#allocation2] sm:$0x1] %v14
  $region1: #{tpu_custom_call.1} parent=0
    #allocation3 [shape = 'u8[16384]{0}', space=vmem, size = 0x4000, scoped, tag = 'input window, operand 0, single buffered']
    #allocation4 [shape = 's32[1]{0}', space=sflag, size = 0x4, scoped, tag = 'scoped memory for tpu_custom_call.1']
    #allocation5 [shape = 'u8[131072]{0}', space=vmem, size = 0x20000, scoped, tag = 'input window, operand 3, single buffered']
    #allocation6 [shape = 's32[1]{0}', space=sflag, size = 0x4, scoped, tag = 'scoped memory for tpu_custom_call.1']
    #allocation7 [shape = 'u8[131072]{0}', space=vmem, size = 0x20000, scoped, tag = 'input window, operand 5, single buffered']
    %16 = vsyncpa [#allocation4], 0
    %17 = vsyncpa [#allocation6], 0
    // Predicated region
    $region2: #{tpu_custom_call.1} parent=1 // pred_check
      _
    $region3: #{tpu_custom_call.1} parent=1 // pred_check_branch
      %19 = sbr.rel (0) target = $region5
    $region4: #{tpu_custom_call.1} parent=1 // pred_region
      %s21 = ssub.s32 512, 512
      %22 = vsyncadd [#allocation4], %s21
      %s23 = sshll.u32 [#allocation3], 4
      %s24 = int_to_ptr.vmem [resolvable:$true] %s23
      %29 = dma.hbm_to_vmem [thread:$0]  %s0, 512, %s24, [#allocation4], 128, 128, 8
    $region5: #{tpu_custom_call.1} parent=1 // pred_fallthru
      _
    // Predicated region
    $region6: #{tpu_custom_call.1} parent=1 // pred_check
      _
    $region7: #{tpu_custom_call.1} parent=1 // pred_check_branch
      %31 = sbr.rel (0) target = $region9
    $region8: #{tpu_custom_call.1} parent=1 // pred_region
      _
    $region9: #{tpu_custom_call.1} parent=1 // pred_fallthru
      _
    // Predicated region
    $region10: #{tpu_custom_call.1} parent=1 // pred_check
      _
    $region11: #{tpu_custom_call.1} parent=1 // pred_check_branch
      %33 = sbr.rel (0) target = $region13
    $region12: #{tpu_custom_call.1} parent=1 // pred_region
      _
    $region13: #{tpu_custom_call.1} parent=1 // pred_fallthru
      _
    // Predicated region
    $region14: #{tpu_custom_call.1} parent=1 // pred_check
      _
    $region15: #{tpu_custom_call.1} parent=1 // pred_check_branch
      %35 = sbr.rel (0) target = $region17
    $region16: #{tpu_custom_call.1} parent=1 // pred_region
      %s37 = ssub.s32 4096, 4096
      %38 = vsyncadd [#allocation6], %s37
      %s39 = sshll.u32 [#allocation5], 4
      %s40 = int_to_ptr.vmem [resolvable:$true] %s39
      %45 = dma.hbm_to_vmem [thread:$0]  %s3, 4096, %s40, [#allocation6], 128, 128, 8
    $region17: #{tpu_custom_call.1} parent=1 // pred_fallthru
      _
    // Predicated region
    $region18: #{tpu_custom_call.1} parent=1 // pred_check
      _
    $region19: #{tpu_custom_call.1} parent=1 // pred_check_branch
      %47 = sbr.rel (0) target = $region21
    $region20: #{tpu_custom_call.1} parent=1 // pred_region
      _
    $region21: #{tpu_custom_call.1} parent=1 // pred_fallthru
      _
    // Predicated region
    $region22: #{tpu_custom_call.1} parent=1 // pred_check
      _
    $region23: #{tpu_custom_call.1} parent=1 // pred_check_branch
      %49 = sbr.rel (0) target = $region25
    $region24: #{tpu_custom_call.1} parent=1 // pred_region
      %s51 = ssub.s32 4096, 4096
      %52 = vsyncadd [#allocation6], %s51
      %s53 = sshll.u32 [#allocation7], 4
      %s54 = int_to_ptr.vmem [resolvable:$true] %s53
      %59 = dma.hbm_to_vmem [thread:$0]  %s5, 4096, %s54, [#allocation6], 128, 128, 8
    $region25: #{tpu_custom_call.1} parent=1 // pred_fallthru
      _
    // Predicated region
    $region26: #{tpu_custom_call.1} parent=1 // pred_check
      _
    $region27: #{tpu_custom_call.1} parent=1 // pred_check_branch
      %61 = sbr.rel (0) target = $region29
    $region28: #{tpu_custom_call.1} parent=1 // pred_region
      _
    $region29: #{tpu_custom_call.1} parent=1 // pred_fallthru
      _
    // Predicated region
    $region30: #{tpu_custom_call.1} parent=1 // pred_check
      _
    $region31: #{tpu_custom_call.1} parent=1 // pred_check_branch
      %63 = sbr.rel (0) target = $region33
    $region32: #{tpu_custom_call.1} parent=1 // pred_region
      _
    $region33: #{tpu_custom_call.1} parent=1 // pred_fallthru
      _
    // Predicated region
    $region34: #{tpu_custom_call.1} parent=1 // pred_check
      _
    $region35: #{tpu_custom_call.1} parent=1 // pred_check_branch
      %65 = sbr.rel (0) target = $region37
    $region36: #{tpu_custom_call.1} parent=1 // pred_region
      _
    $region37: #{tpu_custom_call.1} parent=1 // pred_fallthru
      _
    // Predicated region
    $region38: #{tpu_custom_call.1} parent=1 // pred_check
      _
    $region39: #{tpu_custom_call.1} parent=1 // pred_check_branch
      %67 = sbr.rel (0) target = $region41
    $region40: #{tpu_custom_call.1} parent=1 // pred_region
      %68 = dma.done [#allocation4], 512
    $region41: #{tpu_custom_call.1} parent=1 // pred_fallthru
      _
    // Predicated region
    $region42: #{tpu_custom_call.1} parent=1 // pred_check
      _
    $region43: #{tpu_custom_call.1} parent=1 // pred_check_branch
      %70 = sbr.rel (0) target = $region45
    $region44: #{tpu_custom_call.1} parent=1 // pred_region
      %71 = dma.done [#allocation6], 4096
    $region45: #{tpu_custom_call.1} parent=1 // pred_fallthru
      _
    // Predicated region
    $region46: #{tpu_custom_call.1} parent=1 // pred_check
      _
    $region47: #{tpu_custom_call.1} parent=1 // pred_check_branch
      %73 = sbr.rel (0) target = $region49
    $region48: #{tpu_custom_call.1} parent=1 // pred_region
      %74 = dma.done [#allocation6], 4096
    $region49: #{tpu_custom_call.1} parent=1 // pred_fallthru
      _
    %v76 = vld [vmem:[#allocation3] sm:$0xff]
    %v77 = vld [vmem:[#allocation3 + $0x8] sm:$0xff]
    %v78 = vld [vmem:[#allocation3 + $0x10] sm:$0xff]
    %v79 = vld [vmem:[#allocation3 + $0x18] sm:$0xff]
    %v80 = vpack.c.bf16 %v77, %v76
    %v81 = vpack.c.bf16 %v79, %v78
    %v82 = vld [vmem:[%s1] sm:$0xff]
    %v83 = vld [vmem:[%s1 + $0x8] sm:$0xff]
    %v84 = vld [vmem:[%s1 + $0x10] sm:$0xff]
    %v85 = vld [vmem:[%s1 + $0x18] sm:$0xff]
    %v86 = vld [vmem:[%s1 + $0x20] sm:$0xff]
    %v87 = vld [vmem:[%s1 + $0x28] sm:$0xff]
    %v88 = vld [vmem:[%s1 + $0x30] sm:$0xff]
    %v89 = vld [vmem:[%s1 + $0x38] sm:$0xff]
    %v90 = vld [vmem:[%s1 + $0x40] sm:$0xff]
    %v91 = vld [vmem:[%s1 + $0x48] sm:$0xff]
    %v92 = vld [vmem:[%s1 + $0x50] sm:$0xff]
    %v93 = vld [vmem:[%s1 + $0x58] sm:$0xff]
    %v94 = vld [vmem:[%s1 + $0x60] sm:$0xff]
    %v95 = vld [vmem:[%s1 + $0x68] sm:$0xff]
    %v96 = vld [vmem:[%s1 + $0x70] sm:$0xff]
    %v97 = vld [vmem:[%s1 + $0x78] sm:$0xff]
    %v98 = vld [vmem:[%s2] sm:$0x3]
    %v100 = vlaneseq
    %v101 = vshrl.u32 %v100, 7
    %v102 = vsub.s32 0, %v101
    %v103 = vrot.slane %v98, %v102
    %v104 = vlaneseq
    %v105 = vshrl.u32 %v104, 7
    %v106 = vsub.s32 1, %v105
    %v107 = vrot.slane %v98, %v106
    %v126 = vunpack.c.l.b16 %v82
    %v127 = vunpack.c.h.b16 %v82
    %v128 = vunpack.c.l.b16 %v83
    %v129 = vunpack.c.h.b16 %v83
    %v130 = vunpack.c.l.b16 %v84
    %v131 = vunpack.c.h.b16 %v84
    %v132 = vunpack.c.l.b16 %v85
    %v133 = vunpack.c.h.b16 %v85
    %v134 = vunpack.c.l.b16 %v86
    %v135 = vunpack.c.h.b16 %v86
    %v136 = vunpack.c.l.b16 %v87
    %v137 = vunpack.c.h.b16 %v87
    %v138 = vunpack.c.l.b16 %v88
    %v139 = vunpack.c.h.b16 %v88
    %v140 = vunpack.c.l.b16 %v89
    %v141 = vunpack.c.h.b16 %v89
    %v142 = vunpack.c.l.b16 %v90
    %v143 = vunpack.c.h.b16 %v90
    %v144 = vunpack.c.l.b16 %v91
    %v145 = vunpack.c.h.b16 %v91
    %v146 = vunpack.c.l.b16 %v92
    %v147 = vunpack.c.h.b16 %v92
    %v148 = vunpack.c.l.b16 %v93
    %v149 = vunpack.c.h.b16 %v93
    %v150 = vunpack.c.l.b16 %v94
    %v151 = vunpack.c.h.b16 %v94
    %v152 = vunpack.c.l.b16 %v95
    %v153 = vunpack.c.h.b16 %v95
    %v154 = vunpack.c.l.b16 %v96
    %v155 = vunpack.c.h.b16 %v96
    %v156 = vunpack.c.l.b16 %v97
    %v157 = vunpack.c.h.b16 %v97
    %v158 = vpack.c.b16 %v128, %v126
    %v159 = vpack.c.b16 %v129, %v127
    %v160 = vpack.c.b16 %v132, %v130
    %v161 = vpack.c.b16 %v133, %v131
    %v162 = vpack.c.b16 %v136, %v134
    %v163 = vpack.c.b16 %v137, %v135
    %v164 = vpack.c.b16 %v140, %v138
    %v165 = vpack.c.b16 %v141, %v139
    %v166 = vpack.c.b16 %v144, %v142
    %v167 = vpack.c.b16 %v145, %v143
    %v168 = vpack.c.b16 %v148, %v146
    %v169 = vpack.c.b16 %v149, %v147
    %v170 = vpack.c.b16 %v152, %v150
    %v171 = vpack.c.b16 %v153, %v151
    %v172 = vpack.c.b16 %v156, %v154
    %v173 = vpack.c.b16 %v157, %v155
    %190 = vmatprep.subr.bf16.mxu0 %v173
    %191 = vmatpush1.bf16.msra.mxu0 %v172
    %192 = vmatprep.subr.bf16.mxu0 %v171
    %193 = vmatpush1.bf16.msra.mxu0 %v170
    %194 = vmatprep.subr.bf16.mxu0 %v169
    %195 = vmatpush1.bf16.msra.mxu0 %v168
    %196 = vmatprep.subr.bf16.mxu0 %v167
    %197 = vmatpush1.bf16.msra.mxu0 %v166
    %198 = vmatprep.subr.bf16.mxu0 %v165
    %199 = vmatpush1.bf16.msra.mxu0 %v164
    %200 = vmatprep.subr.bf16.mxu0 %v163
    %201 = vmatpush1.bf16.msra.mxu0 %v162
    %202 = vmatprep.subr.bf16.mxu0 %v161
    %203 = vmatpush1.bf16.msra.mxu0 %v160
    %204 = vmatprep.subr.bf16.mxu0 %v159
    %205 = vmatpush1.bf16.msra.mxu0 %v158
    %206 = vmatprep.subr.bf16.mxu0 0
    %207 = vmatpush2.bf16.msra.mxu0 0
    %208 = vmatprep.subr.bf16.mxu0 0
    %209 = vmatpush2.bf16.msra.mxu0 0
    %210 = vmatprep.subr.bf16.mxu0 0
    %211 = vmatpush2.bf16.msra.mxu0 0
    %212 = vmatprep.subr.bf16.mxu0 0
    %213 = vmatpush2.bf16.msra.mxu0 0
    %214 = vmatprep.subr.bf16.mxu0 0
    %215 = vmatpush2.bf16.msra.mxu0 0
    %216 = vmatprep.subr.bf16.mxu0 0
    %217 = vmatpush2.bf16.msra.mxu0 0
    %218 = vmatprep.subr.bf16.mxu0 0
    %219 = vmatpush2.bf16.msra.mxu0 0
    %220 = vmatprep.subr.bf16.mxu0 0
    %221 = vmatpush2.bf16.msra.mxu0 0
    %222 = vmatprep.mubr.bf16.mxu0 0
    %223 = vmatmul.mubr.bf16.gmra.mxu0 %v80
    %v224 = vpop.f32.mrf.mxu0
    %v225 = vadd.f32 %v103, %v224
    %v226 = vpop.f32.mrf.mxu0
    %v227 = vadd.f32 %v107, %v226
    %v228 = vpop.f32.mrf.mxu0
    %v229 = vadd.f32 %v103, %v228
    %v230 = vpop.f32.mrf.mxu0
    %v231 = vadd.f32 %v107, %v230
    %232 = vmatprep.mubr.bf16.mxu0 0
    %233 = vmatmul.mubr.bf16.gmra.mxu0 %v81
    %v234 = vpop.f32.mrf.mxu0
    %v235 = vadd.f32 %v103, %v234
    %v236 = vpop.f32.mrf.mxu0
    %v237 = vadd.f32 %v107, %v236
    %v238 = vpop.f32.mrf.mxu0
    %v239 = vadd.f32 %v103, %v238
    %v240 = vpop.f32.mrf.mxu0
    %v241 = vadd.f32 %v107, %v240
    %242 = vdwg.mxu0
    %vm243 = vcmp.gt.f32.partialorder %v225, 0.0
    %vm244 = vcmp.gt.f32.partialorder %v227, 0.0
    %vm245 = vcmp.gt.f32.partialorder %v229, 0.0
    %vm246 = vcmp.gt.f32.partialorder %v231, 0.0
    %vm247 = vcmp.gt.f32.partialorder %v235, 0.0
    %vm248 = vcmp.gt.f32.partialorder %v237, 0.0
    %vm249 = vcmp.gt.f32.partialorder %v239, 0.0
    %vm250 = vcmp.gt.f32.partialorder %v241, 0.0
    %v251 = vmul.f32 %v225, 0.01
    %v252 = vmul.f32 %v227, 0.01
    %v253 = vmul.f32 %v229, 0.01
    %v254 = vmul.f32 %v231, 0.01
    %v255 = vmul.f32 %v235, 0.01
    %v256 = vmul.f32 %v237, 0.01
    %v257 = vmul.f32 %v239, 0.01
    %v258 = vmul.f32 %v241, 0.01
    %v259 = vsel %vm243, %v225, %v251
    %v260 = vsel %vm244, %v227, %v252
    %v261 = vsel %vm245, %v229, %v253
    %v262 = vsel %vm246, %v231, %v254
    %v263 = vsel %vm247, %v235, %v255
    %v264 = vsel %vm248, %v237, %v256
    %v265 = vsel %vm249, %v239, %v257
    %v266 = vsel %vm250, %v241, %v258
    %v267 = vpack.c.bf16 %v261, %v259
    %v268 = vpack.c.bf16 %v262, %v260
    %v269 = vpack.c.bf16 %v265, %v263
    %v270 = vpack.c.bf16 %v266, %v264
    %v271 = vld [vmem:[#allocation5] sm:$0xff]
    %v272 = vld [vmem:[#allocation5 + $0x8] sm:$0xff]
    %v273 = vld [vmem:[#allocation5 + $0x10] sm:$0xff]
    %v274 = vld [vmem:[#allocation5 + $0x18] sm:$0xff]
    %v275 = vld [vmem:[#allocation5 + $0x20] sm:$0xff]
    %v276 = vld [vmem:[#allocation5 + $0x28] sm:$0xff]
    %v277 = vld [vmem:[#allocation5 + $0x30] sm:$0xff]
    %v278 = vld [vmem:[#allocation5 + $0x38] sm:$0xff]
    %v279 = vld [vmem:[#allocation5 + $0x40] sm:$0xff]
    %v280 = vld [vmem:[#allocation5 + $0x48] sm:$0xff]
    %v281 = vld [vmem:[#allocation5 + $0x50] sm:$0xff]
    %v282 = vld [vmem:[#allocation5 + $0x58] sm:$0xff]
    %v283 = vld [vmem:[#allocation5 + $0x60] sm:$0xff]
    %v284 = vld [vmem:[#allocation5 + $0x68] sm:$0xff]
    %v285 = vld [vmem:[#allocation5 + $0x70] sm:$0xff]
    %v286 = vld [vmem:[#allocation5 + $0x78] sm:$0xff]
    %v287 = vld [vmem:[#allocation5 + $0x80] sm:$0xff]
    %v288 = vld [vmem:[#allocation5 + $0x88] sm:$0xff]
    %v289 = vld [vmem:[#allocation5 + $0x90] sm:$0xff]
    %v290 = vld [vmem:[#allocation5 + $0x98] sm:$0xff]
    %v291 = vld [vmem:[#allocation5 + $0xa0] sm:$0xff]
    %v292 = vld [vmem:[#allocation5 + $0xa8] sm:$0xff]
    %v293 = vld [vmem:[#allocation5 + $0xb0] sm:$0xff]
    %v294 = vld [vmem:[#allocation5 + $0xb8] sm:$0xff]
    %v295 = vld [vmem:[#allocation5 + $0xc0] sm:$0xff]
    %v296 = vld [vmem:[#allocation5 + $0xc8] sm:$0xff]
    %v297 = vld [vmem:[#allocation5 + $0xd0] sm:$0xff]
    %v298 = vld [vmem:[#allocation5 + $0xd8] sm:$0xff]
    %v299 = vld [vmem:[#allocation5 + $0xe0] sm:$0xff]
    %v300 = vld [vmem:[#allocation5 + $0xe8] sm:$0xff]
    %v301 = vld [vmem:[#allocation5 + $0xf0] sm:$0xff]
    %v302 = vld [vmem:[#allocation5 + $0xf8] sm:$0xff]
    %v303 = vld [vmem:[%s4] sm:$0x3]
    %v305 = vlaneseq
    %v306 = vshrl.u32 %v305, 7
    %v307 = vsub.s32 0, %v306
    %v308 = vrot.slane %v303, %v307
    %v309 = vlaneseq
    %v310 = vshrl.u32 %v309, 7
    %v311 = vsub.s32 1, %v310
    %v312 = vrot.slane %v303, %v311
    %v347 = vunpack.c.l.b16 %v271
    %v348 = vunpack.c.h.b16 %v271
    %v349 = vunpack.c.l.b16 %v272
    %v350 = vunpack.c.h.b16 %v272
    %v351 = vunpack.c.l.b16 %v273
    %v352 = vunpack.c.h.b16 %v273
    %v353 = vunpack.c.l.b16 %v274
    %v354 = vunpack.c.h.b16 %v274
    %v355 = vunpack.c.l.b16 %v275
    %v356 = vunpack.c.h.b16 %v275
    %v357 = vunpack.c.l.b16 %v276
    %v358 = vunpack.c.h.b16 %v276
    %v359 = vunpack.c.l.b16 %v277
    %v360 = vunpack.c.h.b16 %v277
    %v361 = vunpack.c.l.b16 %v278
    %v362 = vunpack.c.h.b16 %v278
    %v363 = vunpack.c.l.b16 %v279
    %v364 = vunpack.c.h.b16 %v279
    %v365 = vunpack.c.l.b16 %v280
    %v366 = vunpack.c.h.b16 %v280
    %v367 = vunpack.c.l.b16 %v281
    %v368 = vunpack.c.h.b16 %v281
    %v369 = vunpack.c.l.b16 %v282
    %v370 = vunpack.c.h.b16 %v282
    %v371 = vunpack.c.l.b16 %v283
    %v372 = vunpack.c.h.b16 %v283
    %v373 = vunpack.c.l.b16 %v284
    %v374 = vunpack.c.h.b16 %v284
    %v375 = vunpack.c.l.b16 %v285
    %v376 = vunpack.c.h.b16 %v285
    %v377 = vunpack.c.l.b16 %v286
    %v378 = vunpack.c.h.b16 %v286
    %v379 = vunpack.c.l.b16 %v287
    %v380 = vunpack.c.h.b16 %v287
    %v381 = vunpack.c.l.b16 %v288
    %v382 = vunpack.c.h.b16 %v288
    %v383 = vunpack.c.l.b16 %v289
    %v384 = vunpack.c.h.b16 %v289
    %v385 = vunpack.c.l.b16 %v290
    %v386 = vunpack.c.h.b16 %v290
    %v387 = vunpack.c.l.b16 %v291
    %v388 = vunpack.c.h.b16 %v291
    %v389 = vunpack.c.l.b16 %v292
    %v390 = vunpack.c.h.b16 %v292
    %v391 = vunpack.c.l.b16 %v293
    %v392 = vunpack.c.h.b16 %v293
    %v393 = vunpack.c.l.b16 %v294
    %v394 = vunpack.c.h.b16 %v294
    %v395 = vunpack.c.l.b16 %v295
    %v396 = vunpack.c.h.b16 %v295
    %v397 = vunpack.c.l.b16 %v296
    %v398 = vunpack.c.h.b16 %v296
    %v399 = vunpack.c.l.b16 %v297
    %v400 = vunpack.c.h.b16 %v297
    %v401 = vunpack.c.l.b16 %v298
    %v402 = vunpack.c.h.b16 %v298
    %v403 = vunpack.c.l.b16 %v299
    %v404 = vunpack.c.h.b16 %v299
    %v405 = vunpack.c.l.b16 %v300
    %v406 = vunpack.c.h.b16 %v300
    %v407 = vunpack.c.l.b16 %v301
    %v408 = vunpack.c.h.b16 %v301
    %v409 = vunpack.c.l.b16 %v302
    %v410 = vunpack.c.h.b16 %v302
    %v411 = vpack.c.b16 %v349, %v347
    %v412 = vpack.c.b16 %v350, %v348
    %v413 = vpack.c.b16 %v353, %v351
    %v414 = vpack.c.b16 %v354, %v352
    %v415 = vpack.c.b16 %v357, %v355
    %v416 = vpack.c.b16 %v358, %v356
    %v417 = vpack.c.b16 %v361, %v359
    %v418 = vpack.c.b16 %v362, %v360
    %v419 = vpack.c.b16 %v365, %v363
    %v420 = vpack.c.b16 %v366, %v364
    %v421 = vpack.c.b16 %v369, %v367
    %v422 = vpack.c.b16 %v370, %v368
    %v423 = vpack.c.b16 %v373, %v371
    %v424 = vpack.c.b16 %v374, %v372
    %v425 = vpack.c.b16 %v377, %v375
    %v426 = vpack.c.b16 %v378, %v376
    %v427 = vpack.c.b16 %v381, %v379
    %v428 = vpack.c.b16 %v382, %v380
    %v429 = vpack.c.b16 %v385, %v383
    %v430 = vpack.c.b16 %v386, %v384
    %v431 = vpack.c.b16 %v389, %v387
    %v432 = vpack.c.b16 %v390, %v388
    %v433 = vpack.c.b16 %v393, %v391
    %v434 = vpack.c.b16 %v394, %v392
    %v435 = vpack.c.b16 %v397, %v395
    %v436 = vpack.c.b16 %v398, %v396
    %v437 = vpack.c.b16 %v401, %v399
    %v438 = vpack.c.b16 %v402, %v400
    %v439 = vpack.c.b16 %v405, %v403
    %v440 = vpack.c.b16 %v406, %v404
    %v441 = vpack.c.b16 %v409, %v407
    %v442 = vpack.c.b16 %v410, %v408
    %475 = vmatprep.subr.bf16.mxu0 %v426
    %476 = vmatpush1.bf16.msra.mxu0 %v425
    %477 = vmatprep.subr.bf16.mxu0 %v424
    %478 = vmatpush1.bf16.msra.mxu0 %v423
    %479 = vmatprep.subr.bf16.mxu0 %v422
    %480 = vmatpush1.bf16.msra.mxu0 %v421
    %481 = vmatprep.subr.bf16.mxu0 %v420
    %482 = vmatpush1.bf16.msra.mxu0 %v419
    %483 = vmatprep.subr.bf16.mxu0 %v418
    %484 = vmatpush1.bf16.msra.mxu0 %v417
    %485 = vmatprep.subr.bf16.mxu0 %v416
    %486 = vmatpush1.bf16.msra.mxu0 %v415
    %487 = vmatprep.subr.bf16.mxu0 %v414
    %488 = vmatpush1.bf16.msra.mxu0 %v413
    %489 = vmatprep.subr.bf16.mxu0 %v412
    %490 = vmatpush1.bf16.msra.mxu0 %v411
    %491 = vmatprep.subr.bf16.mxu0 %v442
    %492 = vmatpush2.bf16.msra.mxu0 %v441
    %493 = vmatprep.subr.bf16.mxu0 %v440
    %494 = vmatpush2.bf16.msra.mxu0 %v439
    %495 = vmatprep.subr.bf16.mxu0 %v438
    %496 = vmatpush2.bf16.msra.mxu0 %v437
    %497 = vmatprep.subr.bf16.mxu0 %v436
    %498 = vmatpush2.bf16.msra.mxu0 %v435
    %499 = vmatprep.subr.bf16.mxu0 %v434
    %500 = vmatpush2.bf16.msra.mxu0 %v433
    %501 = vmatprep.subr.bf16.mxu0 %v432
    %502 = vmatpush2.bf16.msra.mxu0 %v431
    %503 = vmatprep.subr.bf16.mxu0 %v430
    %504 = vmatpush2.bf16.msra.mxu0 %v429
    %505 = vmatprep.subr.bf16.mxu0 %v428
    %506 = vmatpush2.bf16.msra.mxu0 %v427
    %507 = vmatprep.mubr.bf16.mxu0 %v268
    %508 = vmatmul.mubr.bf16.gmra.mxu0 %v267
    %v509 = vpop.f32.mrf.mxu0
    %v510 = vadd.f32 %v308, %v509
    %v511 = vpop.f32.mrf.mxu0
    %v512 = vadd.f32 %v312, %v511
    %v513 = vpop.f32.mrf.mxu0
    %v514 = vadd.f32 %v308, %v513
    %v515 = vpop.f32.mrf.mxu0
    %v516 = vadd.f32 %v312, %v515
    %517 = vmatprep.mubr.bf16.mxu0 %v270
    %518 = vmatmul.mubr.bf16.gmra.mxu0 %v269
    %v519 = vpop.f32.mrf.mxu0
    %v520 = vadd.f32 %v308, %v519
    %v521 = vpop.f32.mrf.mxu0
    %v522 = vadd.f32 %v312, %v521
    %v523 = vpop.f32.mrf.mxu0
    %v524 = vadd.f32 %v308, %v523
    %v525 = vpop.f32.mrf.mxu0
    %v526 = vadd.f32 %v312, %v525
    %527 = vdwg.mxu0
    %vm528 = vcmp.gt.f32.partialorder %v510, 0.0
    %vm529 = vcmp.gt.f32.partialorder %v512, 0.0
    %vm530 = vcmp.gt.f32.partialorder %v514, 0.0
    %vm531 = vcmp.gt.f32.partialorder %v516, 0.0
    %vm532 = vcmp.gt.f32.partialorder %v520, 0.0
    %vm533 = vcmp.gt.f32.partialorder %v522, 0.0
    %vm534 = vcmp.gt.f32.partialorder %v524, 0.0
    %vm535 = vcmp.gt.f32.partialorder %v526, 0.0
    %v536 = vmul.f32 %v510, 0.01
    %v537 = vmul.f32 %v512, 0.01
    %v538 = vmul.f32 %v514, 0.01
    %v539 = vmul.f32 %v516, 0.01
    %v540 = vmul.f32 %v520, 0.01
    %v541 = vmul.f32 %v522, 0.01
    %v542 = vmul.f32 %v524, 0.01
    %v543 = vmul.f32 %v526, 0.01
    %v544 = vsel %vm528, %v510, %v536
    %v545 = vsel %vm529, %v512, %v537
    %v546 = vsel %vm530, %v514, %v538
    %v547 = vsel %vm531, %v516, %v539
    %v548 = vsel %vm532, %v520, %v540
    %v549 = vsel %vm533, %v522, %v541
    %v550 = vsel %vm534, %v524, %v542
    %v551 = vsel %vm535, %v526, %v543
    %v552 = vpack.c.bf16 %v546, %v544
    %v553 = vpack.c.bf16 %v547, %v545
    %v554 = vpack.c.bf16 %v550, %v548
    %v555 = vpack.c.bf16 %v551, %v549
    %v556 = vld [vmem:[#allocation7] sm:$0xff]
    %v557 = vld [vmem:[#allocation7 + $0x8] sm:$0xff]
    %v558 = vld [vmem:[#allocation7 + $0x10] sm:$0xff]
    %v559 = vld [vmem:[#allocation7 + $0x18] sm:$0xff]
    %v560 = vld [vmem:[#allocation7 + $0x20] sm:$0xff]
    %v561 = vld [vmem:[#allocation7 + $0x28] sm:$0xff]
    %v562 = vld [vmem:[#allocation7 + $0x30] sm:$0xff]
    %v563 = vld [vmem:[#allocation7 + $0x38] sm:$0xff]
    %v564 = vld [vmem:[#allocation7 + $0x40] sm:$0xff]
    %v565 = vld [vmem:[#allocation7 + $0x48] sm:$0xff]
    %v566 = vld [vmem:[#allocation7 + $0x50] sm:$0xff]
    %v567 = vld [vmem:[#allocation7 + $0x58] sm:$0xff]
    %v568 = vld [vmem:[#allocation7 + $0x60] sm:$0xff]
    %v569 = vld [vmem:[#allocation7 + $0x68] sm:$0xff]
    %v570 = vld [vmem:[#allocation7 + $0x70] sm:$0xff]
    %v571 = vld [vmem:[#allocation7 + $0x78] sm:$0xff]
    %v572 = vld [vmem:[#allocation7 + $0x80] sm:$0xff]
    %v573 = vld [vmem:[#allocation7 + $0x88] sm:$0xff]
    %v574 = vld [vmem:[#allocation7 + $0x90] sm:$0xff]
    %v575 = vld [vmem:[#allocation7 + $0x98] sm:$0xff]
    %v576 = vld [vmem:[#allocation7 + $0xa0] sm:$0xff]
    %v577 = vld [vmem:[#allocation7 + $0xa8] sm:$0xff]
    %v578 = vld [vmem:[#allocation7 + $0xb0] sm:$0xff]
    %v579 = vld [vmem:[#allocation7 + $0xb8] sm:$0xff]
    %v580 = vld [vmem:[#allocation7 + $0xc0] sm:$0xff]
    %v581 = vld [vmem:[#allocation7 + $0xc8] sm:$0xff]
    %v582 = vld [vmem:[#allocation7 + $0xd0] sm:$0xff]
    %v583 = vld [vmem:[#allocation7 + $0xd8] sm:$0xff]
    %v584 = vld [vmem:[#allocation7 + $0xe0] sm:$0xff]
    %v585 = vld [vmem:[#allocation7 + $0xe8] sm:$0xff]
    %v586 = vld [vmem:[#allocation7 + $0xf0] sm:$0xff]
    %v587 = vld [vmem:[#allocation7 + $0xf8] sm:$0xff]
    %v588 = vld [vmem:[%s6] sm:$0x3]
    %v590 = vlaneseq
    %v591 = vshrl.u32 %v590, 7
    %v592 = vsub.s32 0, %v591
    %v593 = vrot.slane %v588, %v592
    %v594 = vlaneseq
    %v595 = vshrl.u32 %v594, 7
    %v596 = vsub.s32 1, %v595
    %v597 = vrot.slane %v588, %v596
    %v632 = vunpack.c.l.b16 %v556
    %v633 = vunpack.c.h.b16 %v556
    %v634 = vunpack.c.l.b16 %v557
    %v635 = vunpack.c.h.b16 %v557
    %v636 = vunpack.c.l.b16 %v558
    %v637 = vunpack.c.h.b16 %v558
    %v638 = vunpack.c.l.b16 %v559
    %v639 = vunpack.c.h.b16 %v559
    %v640 = vunpack.c.l.b16 %v560
    %v641 = vunpack.c.h.b16 %v560
    %v642 = vunpack.c.l.b16 %v561
    %v643 = vunpack.c.h.b16 %v561
    %v644 = vunpack.c.l.b16 %v562
    %v645 = vunpack.c.h.b16 %v562
    %v646 = vunpack.c.l.b16 %v563
    %v647 = vunpack.c.h.b16 %v563
    %v648 = vunpack.c.l.b16 %v564
    %v649 = vunpack.c.h.b16 %v564
    %v650 = vunpack.c.l.b16 %v565
    %v651 = vunpack.c.h.b16 %v565
    %v652 = vunpack.c.l.b16 %v566
    %v653 = vunpack.c.h.b16 %v566
    %v654 = vunpack.c.l.b16 %v567
    %v655 = vunpack.c.h.b16 %v567
    %v656 = vunpack.c.l.b16 %v568
    %v657 = vunpack.c.h.b16 %v568
    %v658 = vunpack.c.l.b16 %v569
    %v659 = vunpack.c.h.b16 %v569
    %v660 = vunpack.c.l.b16 %v570
    %v661 = vunpack.c.h.b16 %v570
    %v662 = vunpack.c.l.b16 %v571
    %v663 = vunpack.c.h.b16 %v571
    %v664 = vunpack.c.l.b16 %v572
    %v665 = vunpack.c.h.b16 %v572
    %v666 = vunpack.c.l.b16 %v573
    %v667 = vunpack.c.h.b16 %v573
    %v668 = vunpack.c.l.b16 %v574
    %v669 = vunpack.c.h.b16 %v574
    %v670 = vunpack.c.l.b16 %v575
    %v671 = vunpack.c.h.b16 %v575
    %v672 = vunpack.c.l.b16 %v576
    %v673 = vunpack.c.h.b16 %v576
    %v674 = vunpack.c.l.b16 %v577
    %v675 = vunpack.c.h.b16 %v577
    %v676 = vunpack.c.l.b16 %v578
    %v677 = vunpack.c.h.b16 %v578
    %v678 = vunpack.c.l.b16 %v579
    %v679 = vunpack.c.h.b16 %v579
    %v680 = vunpack.c.l.b16 %v580
    %v681 = vunpack.c.h.b16 %v580
    %v682 = vunpack.c.l.b16 %v581
    %v683 = vunpack.c.h.b16 %v581
    %v684 = vunpack.c.l.b16 %v582
    %v685 = vunpack.c.h.b16 %v582
    %v686 = vunpack.c.l.b16 %v583
    %v687 = vunpack.c.h.b16 %v583
    %v688 = vunpack.c.l.b16 %v584
    %v689 = vunpack.c.h.b16 %v584
    %v690 = vunpack.c.l.b16 %v585
    %v691 = vunpack.c.h.b16 %v585
    %v692 = vunpack.c.l.b16 %v586
    %v693 = vunpack.c.h.b16 %v586
    %v694 = vunpack.c.l.b16 %v587
    %v695 = vunpack.c.h.b16 %v587
    %v696 = vpack.c.b16 %v634, %v632
    %v697 = vpack.c.b16 %v635, %v633
    %v698 = vpack.c.b16 %v638, %v636
    %v699 = vpack.c.b16 %v639, %v637
    %v700 = vpack.c.b16 %v642, %v640
    %v701 = vpack.c.b16 %v643, %v641
    %v702 = vpack.c.b16 %v646, %v644
    %v703 = vpack.c.b16 %v647, %v645
    %v704 = vpack.c.b16 %v650, %v648
    %v705 = vpack.c.b16 %v651, %v649
    %v706 = vpack.c.b16 %v654, %v652
    %v707 = vpack.c.b16 %v655, %v653
    %v708 = vpack.c.b16 %v658, %v656
    %v709 = vpack.c.b16 %v659, %v657
    %v710 = vpack.c.b16 %v662, %v660
    %v711 = vpack.c.b16 %v663, %v661
    %v712 = vpack.c.b16 %v666, %v664
    %v713 = vpack.c.b16 %v667, %v665
    %v714 = vpack.c.b16 %v670, %v668
    %v715 = vpack.c.b16 %v671, %v669
    %v716 = vpack.c.b16 %v674, %v672
    %v717 = vpack.c.b16 %v675, %v673
    %v718 = vpack.c.b16 %v678, %v676
    %v719 = vpack.c.b16 %v679, %v677
    %v720 = vpack.c.b16 %v682, %v680
    %v721 = vpack.c.b16 %v683, %v681
    %v722 = vpack.c.b16 %v686, %v684
    %v723 = vpack.c.b16 %v687, %v685
    %v724 = vpack.c.b16 %v690, %v688
    %v725 = vpack.c.b16 %v691, %v689
    %v726 = vpack.c.b16 %v694, %v692
    %v727 = vpack.c.b16 %v695, %v693
    %760 = vmatprep.subr.bf16.mxu0 %v711
    %761 = vmatpush1.bf16.msra.mxu0 %v710
    %762 = vmatprep.subr.bf16.mxu0 %v709
    %763 = vmatpush1.bf16.msra.mxu0 %v708
    %764 = vmatprep.subr.bf16.mxu0 %v707
    %765 = vmatpush1.bf16.msra.mxu0 %v706
    %766 = vmatprep.subr.bf16.mxu0 %v705
    %767 = vmatpush1.bf16.msra.mxu0 %v704
    %768 = vmatprep.subr.bf16.mxu0 %v703
    %769 = vmatpush1.bf16.msra.mxu0 %v702
    %770 = vmatprep.subr.bf16.mxu0 %v701
    %771 = vmatpush1.bf16.msra.mxu0 %v700
    %772 = vmatprep.subr.bf16.mxu0 %v699
    %773 = vmatpush1.bf16.msra.mxu0 %v698
    %774 = vmatprep.subr.bf16.mxu0 %v697
    %775 = vmatpush1.bf16.msra.mxu0 %v696
    %776 = vmatprep.subr.bf16.mxu0 %v727
    %777 = vmatpush2.bf16.msra.mxu0 %v726
    %778 = vmatprep.subr.bf16.mxu0 %v725
    %779 = vmatpush2.bf16.msra.mxu0 %v724
    %780 = vmatprep.subr.bf16.mxu0 %v723
    %781 = vmatpush2.bf16.msra.mxu0 %v722
    %782 = vmatprep.subr.bf16.mxu0 %v721
    %783 = vmatpush2.bf16.msra.mxu0 %v720
    %784 = vmatprep.subr.bf16.mxu0 %v719
    %785 = vmatpush2.bf16.msra.mxu0 %v718
    %786 = vmatprep.subr.bf16.mxu0 %v717
    %787 = vmatpush2.bf16.msra.mxu0 %v716
    %788 = vmatprep.subr.bf16.mxu0 %v715
    %789 = vmatpush2.bf16.msra.mxu0 %v714
    %790 = vmatprep.subr.bf16.mxu0 %v713
    %791 = vmatpush2.bf16.msra.mxu0 %v712
    %792 = vmatprep.mubr.bf16.mxu0 %v553
    %793 = vmatmul.mubr.bf16.gmra.mxu0 %v552
    %v794 = vpop.f32.mrf.mxu0
    %v795 = vadd.f32 %v593, %v794
    %v796 = vpop.f32.mrf.mxu0
    %v797 = vadd.f32 %v597, %v796
    %v798 = vpop.f32.mrf.mxu0
    %v799 = vadd.f32 %v593, %v798
    %v800 = vpop.f32.mrf.mxu0
    %v801 = vadd.f32 %v597, %v800
    %802 = vmatprep.mubr.bf16.mxu0 %v555
    %803 = vmatmul.mubr.bf16.gmra.mxu0 %v554
    %v804 = vpop.f32.mrf.mxu0
    %v805 = vadd.f32 %v593, %v804
    %v806 = vpop.f32.mrf.mxu0
    %v807 = vadd.f32 %v597, %v806
    %v808 = vpop.f32.mrf.mxu0
    %v809 = vadd.f32 %v593, %v808
    %v810 = vpop.f32.mrf.mxu0
    %v811 = vadd.f32 %v597, %v810
    %812 = vdwg.mxu0
    %vm813 = vcmp.gt.f32.partialorder %v795, 0.0
    %vm814 = vcmp.gt.f32.partialorder %v797, 0.0
    %vm815 = vcmp.gt.f32.partialorder %v799, 0.0
    %vm816 = vcmp.gt.f32.partialorder %v801, 0.0
    %vm817 = vcmp.gt.f32.partialorder %v805, 0.0
    %vm818 = vcmp.gt.f32.partialorder %v807, 0.0
    %vm819 = vcmp.gt.f32.partialorder %v809, 0.0
    %vm820 = vcmp.gt.f32.partialorder %v811, 0.0
    %v821 = vmul.f32 %v795, 0.01
    %v822 = vmul.f32 %v797, 0.01
    %v823 = vmul.f32 %v799, 0.01
    %v824 = vmul.f32 %v801, 0.01
    %v825 = vmul.f32 %v805, 0.01
    %v826 = vmul.f32 %v807, 0.01
    %v827 = vmul.f32 %v809, 0.01
    %v828 = vmul.f32 %v811, 0.01
    %v829 = vsel %vm813, %v795, %v821
    %v830 = vsel %vm814, %v797, %v822
    %v831 = vsel %vm815, %v799, %v823
    %v832 = vsel %vm816, %v801, %v824
    %v833 = vsel %vm817, %v805, %v825
    %v834 = vsel %vm818, %v807, %v826
    %v835 = vsel %vm819, %v809, %v827
    %v836 = vsel %vm820, %v811, %v828
    %v837 = vpack.c.bf16 %v831, %v829
    %v838 = vpack.c.bf16 %v832, %v830
    %v839 = vpack.c.bf16 %v835, %v833
    %v840 = vpack.c.bf16 %v836, %v834
    %v841 = vld [vmem:[%s7] sm:$0xf]
    %v842 = vld [vmem:[%s7 + $0x4] sm:$0xf]
    %v843 = vld [vmem:[%s7 + $0x8] sm:$0xf]
    %v844 = vld [vmem:[%s7 + $0xc] sm:$0xf]
    %v845 = vld [vmem:[%s7 + $0x10] sm:$0xf]
    %v846 = vld [vmem:[%s7 + $0x14] sm:$0xf]
    %v847 = vld [vmem:[%s7 + $0x18] sm:$0xf]
    %v848 = vld [vmem:[%s7 + $0x1c] sm:$0xf]
    %v849 = vld [vmem:[%s7 + $0x20] sm:$0xf]
    %v850 = vld [vmem:[%s7 + $0x24] sm:$0xf]
    %v851 = vld [vmem:[%s7 + $0x28] sm:$0xf]
    %v852 = vld [vmem:[%s7 + $0x2c] sm:$0xf]
    %v853 = vld [vmem:[%s7 + $0x30] sm:$0xf]
    %v854 = vld [vmem:[%s7 + $0x34] sm:$0xf]
    %v855 = vld [vmem:[%s7 + $0x38] sm:$0xf]
    %v856 = vld [vmem:[%s7 + $0x3c] sm:$0xf]
    %v857 = vld [vmem:[%s7 + $0x40] sm:$0xf]
    %v858 = vld [vmem:[%s7 + $0x44] sm:$0xf]
    %v859 = vld [vmem:[%s7 + $0x48] sm:$0xf]
    %v860 = vld [vmem:[%s7 + $0x4c] sm:$0xf]
    %v861 = vld [vmem:[%s7 + $0x50] sm:$0xf]
    %v862 = vld [vmem:[%s7 + $0x54] sm:$0xf]
    %v863 = vld [vmem:[%s7 + $0x58] sm:$0xf]
    %v864 = vld [vmem:[%s7 + $0x5c] sm:$0xf]
    %v865 = vld [vmem:[%s7 + $0x60] sm:$0xf]
    %v866 = vld [vmem:[%s7 + $0x64] sm:$0xf]
    %v867 = vld [vmem:[%s7 + $0x68] sm:$0xf]
    %v868 = vld [vmem:[%s7 + $0x6c] sm:$0xf]
    %v869 = vld [vmem:[%s7 + $0x70] sm:$0xf]
    %v870 = vld [vmem:[%s7 + $0x74] sm:$0xf]
    %v871 = vld [vmem:[%s7 + $0x78] sm:$0xf]
    %v872 = vld [vmem:[%s7 + $0x7c] sm:$0xf]
    %v873 = vld [vmem:[#allocation2] sm:$0x1]
    %v875 = vlaneseq
    %v876 = vshrl.u32 %v875, 7
    %v877 = vsub.s32 0, %v876
    %v878 = vrot.slane %v873, %v877
    %879 = vset.pattern.permute.xlu0 0
    %880 = vperm.xlu0 %879, %v878
    %v881 = vpop.permute.xlu0 %880
    %v915 = vunpack.c.l.b16 %v841
    %v916 = vunpack.c.l.b16 %v842
    %v917 = vunpack.c.l.b16 %v843
    %v918 = vunpack.c.l.b16 %v844
    %v919 = vunpack.c.l.b16 %v845
    %v920 = vunpack.c.l.b16 %v846
    %v921 = vunpack.c.l.b16 %v847
    %v922 = vunpack.c.l.b16 %v848
    %v923 = vunpack.c.l.b16 %v849
    %v924 = vunpack.c.l.b16 %v850
    %v925 = vunpack.c.l.b16 %v851
    %v926 = vunpack.c.l.b16 %v852
    %v927 = vunpack.c.l.b16 %v853
    %v928 = vunpack.c.l.b16 %v854
    %v929 = vunpack.c.l.b16 %v855
    %v930 = vunpack.c.l.b16 %v856
    %v931 = vunpack.c.l.b16 %v857
    %v932 = vunpack.c.l.b16 %v858
    %v933 = vunpack.c.l.b16 %v859
    %v934 = vunpack.c.l.b16 %v860
    %v935 = vunpack.c.l.b16 %v861
    %v936 = vunpack.c.l.b16 %v862
    %v937 = vunpack.c.l.b16 %v863
    %v938 = vunpack.c.l.b16 %v864
    %v939 = vunpack.c.l.b16 %v865
    %v940 = vunpack.c.l.b16 %v866
    %v941 = vunpack.c.l.b16 %v867
    %v942 = vunpack.c.l.b16 %v868
    %v943 = vunpack.c.l.b16 %v869
    %v944 = vunpack.c.l.b16 %v870
    %v945 = vunpack.c.l.b16 %v871
    %v946 = vunpack.c.l.b16 %v872
    %v947 = vpack.c.b16 %v916, %v915
    %v948 = vpack.c.b16 %v918, %v917
    %v949 = vpack.c.b16 %v920, %v919
    %v950 = vpack.c.b16 %v922, %v921
    %v951 = vpack.c.b16 %v924, %v923
    %v952 = vpack.c.b16 %v926, %v925
    %v953 = vpack.c.b16 %v928, %v927
    %v954 = vpack.c.b16 %v930, %v929
    %v955 = vpack.c.b16 %v932, %v931
    %v956 = vpack.c.b16 %v934, %v933
    %v957 = vpack.c.b16 %v936, %v935
    %v958 = vpack.c.b16 %v938, %v937
    %v959 = vpack.c.b16 %v940, %v939
    %v960 = vpack.c.b16 %v942, %v941
    %v961 = vpack.c.b16 %v944, %v943
    %v962 = vpack.c.b16 %v946, %v945
    %979 = vmatprep.subr.bf16.mxu0 0
    %980 = vmatpush1.bf16.msra.mxu0 %v954
    %981 = vmatprep.subr.bf16.mxu0 0
    %982 = vmatpush1.bf16.msra.mxu0 %v953
    %983 = vmatprep.subr.bf16.mxu0 0
    %984 = vmatpush1.bf16.msra.mxu0 %v952
    %985 = vmatprep.subr.bf16.mxu0 0
    %986 = vmatpush1.bf16.msra.mxu0 %v951
    %987 = vmatprep.subr.bf16.mxu0 0
    %988 = vmatpush1.bf16.msra.mxu0 %v950
    %989 = vmatprep.subr.bf16.mxu0 0
    %990 = vmatpush1.bf16.msra.mxu0 %v949
    %991 = vmatprep.subr.bf16.mxu0 0
    %992 = vmatpush1.bf16.msra.mxu0 %v948
    %993 = vmatprep.subr.bf16.mxu0 0
    %994 = vmatpush1.bf16.msra.mxu0 %v947
    %995 = vmatprep.subr.bf16.mxu0 0
    %996 = vmatpush2.bf16.msra.mxu0 %v962
    %997 = vmatprep.subr.bf16.mxu0 0
    %998 = vmatpush2.bf16.msra.mxu0 %v961
    %999 = vmatprep.subr.bf16.mxu0 0
    %1000 = vmatpush2.bf16.msra.mxu0 %v960
    %1001 = vmatprep.subr.bf16.mxu0 0
    %1002 = vmatpush2.bf16.msra.mxu0 %v959
    %1003 = vmatprep.subr.bf16.mxu0 0
    %1004 = vmatpush2.bf16.msra.mxu0 %v958
    %1005 = vmatprep.subr.bf16.mxu0 0
    %1006 = vmatpush2.bf16.msra.mxu0 %v957
    %1007 = vmatprep.subr.bf16.mxu0 0
    %1008 = vmatpush2.bf16.msra.mxu0 %v956
    %1009 = vmatprep.subr.bf16.mxu0 0
    %1010 = vmatpush2.bf16.msra.mxu0 %v955
    %1011 = vmatprep.mubr.bf16.mxu0 %v838
    %1012 = vmatmul.mubr.bf16.gmra.mxu0 %v837
    %v1013 = vpop.f32.mrf.mxu0
    %v1014 = vadd.f32 %v881, %v1013
    %v1015 = vpop.f32.mrf.mxu0
    %v1016 = vpop.f32.mrf.mxu0
    %v1017 = vadd.f32 %v881, %v1016
    %v1018 = vpop.f32.mrf.mxu0
    %1019 = vmatprep.mubr.bf16.mxu0 %v840
    %1020 = vmatmul.mubr.bf16.gmra.mxu0 %v839
    %v1021 = vpop.f32.mrf.mxu0
    %v1022 = vadd.f32 %v881, %v1021
    %v1023 = vpop.f32.mrf.mxu0
    %v1024 = vpop.f32.mrf.mxu0
    %v1025 = vadd.f32 %v881, %v1024
    %v1026 = vpop.f32.mrf.mxu0
    %1027 = vdwg.mxu0
    %v1028 = vtanh.pop %v1014
    %v1029 = vtanh.pop %v1017
    %v1030 = vtanh.pop %v1022
    %v1031 = vtanh.pop %v1025
    %vm1032 = vcmask 31744
    %1033 = vst.msk [vmem:[%s9] sm:$0xff] %vm1032, %v1028
    %1034 = vst.msk [vmem:[%s9 + $0x8] sm:$0xff] %vm1032, %v1029
    %1035 = vst.msk [vmem:[%s9 + $0x10] sm:$0xff] %vm1032, %v1030
    %1036 = vst.msk [vmem:[%s9 + $0x18] sm:$0xff] %vm1032, %v1031
    // Predicated region
    $region50: #{tpu_custom_call.1} parent=1 // pred_check
      _
    $region51: #{tpu_custom_call.1} parent=1 // pred_check_branch
      %1038 = sbr.rel (0) target = $region53
    $region52: #{tpu_custom_call.1} parent=1 // pred_region
      _
    $region53: #{tpu_custom_call.1} parent=1 // pred_fallthru
      _
    // Predicated region
    $region54: #{tpu_custom_call.1} parent=1 // pred_check
      _
    $region55: #{tpu_custom_call.1} parent=1 // pred_check_branch
      %1040 = sbr.rel (0) target = $region57
    $region56: #{tpu_custom_call.1} parent=1 // pred_region
      _
    $region57: #{tpu_custom_call.1} parent=1 // pred_fallthru
      _
    %1041 = vsyncpa [#allocation4], 1
    %1042 = vsyncpa [#allocation6], 1

</llo_original>
